<compile_context>
chip_gen: v5e
topology: v5e:2x2
jax: 0.10.0
libtpu: 0.0.40
codegen_flags: <defaults>
</compile_context>

<pallas_src>
import functools

import jax
import jax.numpy as jnp
from jax import lax
from jax.experimental import pallas as pl
from jax.experimental.pallas import tpu as pltpu


def _round_up(x, m):
    return ((x + m - 1) // m) * m


def _vmem_capacity_bytes():
    """Physical VMEM per TensorCore; conservative fallback if the query is unavailable."""
    try:
        cap = getattr(pltpu.get_tpu_info(), "vmem_capacity_bytes", None)
        if cap:
            return int(cap)
    except Exception:
        pass
    return 64 * 1024 * 1024  # v7x per-core VMEM (smallest of v5e/v6e/v7x)


def _estimate_vmem_bytes(tT, hB, C_in_p, C_out, K, w_itemsize, fold, has_halo):
    x_b = 4                                               # activations stay f32 in HBM
    b = 2 * C_in_p * tT * x_b                             # input tile, double-buffered
    if has_halo:
        b += 2 * C_in_p * hB * x_b                        # halo tile, double-buffered
    b += 2 * C_out * tT * 4                               # output tile, double-buffered
    b += C_out * K * C_in_p * w_itemsize + C_out * 4      # resident weights + bias (single)
    b += C_in_p * (tT + hB) * (x_b + w_itemsize)          # window + compute-dtype copy
    if fold:
        b += K * C_in_p * tT * w_itemsize                 # im2col buffer
    b += C_out * tT * 4                                   # f32 accumulator
    return b


def _conv1d_elu_kernel(*refs, K, dilation, pad, hB, fold, use_halo, compute_dtype, precision):
    # refs = (x, [halo,] w, b, out)
    #   x    : (C_in_p, tT)       current time tile (time on lanes -> dense stores)
    #   halo : (C_in_p, hB)       previous tile (only its last `pad` columns are used)
    #   w    : (C_out, K*C_in_p)  weight-normalized filter, tap-major, VMEM resident
    #   b    : (C_out, 1)         bias, VMEM resident
    #   out  : (C_out, tT)
    if use_halo:
        x_ref, halo_ref, w_ref, b_ref, o_ref = refs
    else:
        x_ref, w_ref, b_ref, o_ref = refs

    C_in_p = x_ref.shape[0]
    tT = o_ref.shape[-1]

    cur = x_ref[...]                                          # (C_in_p, tT)
    if pad > 0:
        if use_halo:
            left = halo_ref[:, hB - pad:]                     # prev tile's last `pad` cols
            left = jnp.where(pl.program_id(0) > 0, left, 0.0)  # tile 0: causal zeros
        else:
            left = jnp.zeros((C_in_p, pad), cur.dtype)        # single tile: causal zeros
        window = jnp.concatenate([left, cur], axis=-1)        # (C_in_p, pad + tT)
    else:
        window = cur
    window = window.astype(compute_dtype)                     # bf16 MXU operands (f32 acc)

    if K == 1:
        acc = jnp.dot(w_ref[...], window,
                      preferred_element_type=jnp.float32, precision=precision)
    elif fold:
        # im2col: one wide contraction of depth K*C_in_p instead of K shallow ones.
        # TODO(synk): bundle-check that the im2col stores don't bind the single vst slot on v5e.
        taps = [window[:, k * dilation:k * dilation + tT] for k in range(K)]
        xcat = jnp.concatenate(taps, axis=0)                  # (K*C_in_p, tT)
        acc = jnp.dot(w_ref[...], xcat,
                      preferred_element_type=jnp.float32, precision=precision)
    else:
        acc = jnp.zeros((o_ref.shape[0], tT), jnp.float32)
        for k in range(K):                                    # K small & static -> unrolled
            acc += jnp.dot(w_ref[:, k * C_in_p:(k + 1) * C_in_p],
                           window[:, k * dilation:k * dilation + tT],
                           preferred_element_type=jnp.float32, precision=precision)

    acc = acc + b_ref[...]
    # ELU (alpha = 1): x if x > 0 else exp(x) - 1; min() keeps the dead branch finite.
    neg = jnp.exp(jnp.minimum(acc, 0.0)) - 1.0
    o_ref[...] = jnp.where(acc > 0, acc, neg).astype(o_ref.dtype)


def causal_conv1d_elu(x, v, g, bias, *, stride=1, dilation=1, groups=1,
                      time_tile=2048, compute_dtype=jnp.bfloat16):
    """Fused weight_norm Conv1d (causal) + ELU.  x: (B, C_in, T) f32 -> (B, C_out, T)."""
    assert stride == 1, "stride > 1 not implemented"   # TODO(synk): strided pl.ds loads
    assert groups == 1, "groups > 1 not implemented"   # TODO(synk): grouped/depthwise path

    B, C_in, T = x.shape
    C_out, _, K = v.shape

    # weight_norm (dim=0): w[o] = g[o] * v[o] / ||v[o]||_2  (norm over (C_in, K))
    v32 = v.astype(jnp.float32)
    norm = jnp.sqrt(jnp.sum(v32 * v32, axis=(1, 2), keepdims=True))
    w = g.astype(jnp.float32) * v32 / norm                       # (C_out, C_in, K)

    # Pad channels to a sublane multiple so the in-kernel im2col stacks cleanly.
    C_in_p = _round_up(C_in, 8)
    if C_in_p != C_in:
        # TODO(synk): let the producing layer emit sublane-padded activations so this
        # (rare, tiny-channel-count) pad pass disappears in a fused model.
        x = jnp.pad(x, ((0, 0), (0, C_in_p - C_in), (0, 0)))
        w = jnp.pad(w, ((0, 0), (0, C_in_p - C_in), (0, 0)))

    compute_dtype = jnp.dtype(compute_dtype)
    precision = lax.Precision.HIGHEST if compute_dtype == jnp.dtype(jnp.float32) else None

    # Tap-major flat layout so the im2col concat matches: w2[o, k*C_in_p + c] = w[o, c, k]
    w2 = jnp.transpose(w, (0, 2, 1)).reshape(C_out, K * C_in_p).astype(compute_dtype)
    b2 = bias.reshape(C_out, 1).astype(jnp.float32)

    pad = (K - 1) * dilation                                     # causal left pad
    hB = _round_up(pad, 128) if pad > 0 else 0                   # halo block (lane multiple)
    unit = max(hB, 128)
    fold = (K > 1) and (C_in_p < 256)                            # fold taps -> deep contraction
    w_isz = compute_dtype.itemsize

    # Generation-aware tile sizing: keep everything under ~50% of physical VMEM.
    vmem_cap = _vmem_capacity_bytes()
    budget = vmem_cap // 2
    tT = _round_up(max(int(time_tile), 1), unit)
    while tT > unit and _estimate_vmem_bytes(tT, hB, C_in_p, C_out, K, w_isz, fold, pad > 0) > budget:
        tT -= unit

    if tT >= T:
        tT, n_t = T, 1            # single full-extent tile (block == full dim is always legal)
    else:
        n_t = pl.cdiv(T, tT)      # ragged last tile: OOB reads only feed dropped columns
    use_halo = (pad > 0) and (n_t > 1)
    ratio = (tT // hB) if use_halo else 0

    kernel = functools.partial(
        _conv1d_elu_kernel, K=K, dilation=dilation, pad=pad, hB=hB, fold=fold,
        use_halo=use_halo, compute_dtype=compute_dtype, precision=precision)

    # Weights / bias: whole-array VMEM residents (single copy, never double-buffered).
    w_spec = pl.BlockSpec(memory_space=pltpu.MemorySpace.VMEM)
    b_spec = pl.BlockSpec(memory_space=pltpu.MemorySpace.VMEM)
    x_spec = pl.BlockSpec((None, C_in_p, tT), lambda i, b: (b, 0, i))
    o_spec = pl.BlockSpec((None, C_out, tT), lambda i, b: (b, 0, i))

    if use_halo:
        halo_spec = pl.BlockSpec(
            (None, C_in_p, hB),
            lambda i, b: (b, 0, jnp.maximum(i * ratio - 1, 0)))   # previous tile's tail
        in_specs = [x_spec, halo_spec, w_spec, b_spec]
        args = (x, x, w2, b2)
    else:
        in_specs = [x_spec, w_spec, b_spec]
        args = (x, w2, b2)

    return pl.pallas_call(
        kernel,
        out_shape=jax.ShapeDtypeStruct((B, C_out, T), x.dtype),
        grid=(n_t, B),            # time-tile axis first so the megacore split hits the long axis
        in_specs=in_specs,
        out_specs=o_spec,
        compiler_params=pltpu.CompilerParams(
            dimension_semantics=("parallel", "parallel"),
            vmem_limit_bytes=int(vmem_cap * 3 // 4),
        ),
    )(*args)


def _reference(x, v, g, bias, *, dilation=1):
    """Pure-JAX reference of the PyTorch forward pass (for sanity checks)."""
    C_out, _, K = v.shape
    norm = jnp.sqrt(jnp.sum(v * v, axis=(1, 2), keepdims=True))
    w = g * v / norm
    pad = (K - 1) * dilation
    x_p = jnp.pad(x, ((0, 0), (0, 0), (pad, 0)))
    y = lax.conv_general_dilated(
        x_p, w, window_strides=(1,), padding="VALID", rhs_dilation=(dilation,),
        dimension_numbers=("NCH", "OIH", "NCH"), precision=lax.Precision.HIGHEST)
    y = y + bias[None, :, None]
    return jnp.where(y > 0, y, jnp.exp(jnp.minimum(y, 0.0)) - 1.0)


if __name__ == "__main__":
    key = jax.random.PRNGKey(0)

    # Test 1: tiny shapes (B=2, C_in=4, C_out=8, K=3, dil=2, T=16); f32 path,
    # exercises channel sublane-padding + in-kernel causal zeros on a single tile.
    k1, k2, k3, k4 = jax.random.split(key, 4)
    B, Ci, Co, K, T, dil = 2, 4, 8, 3, 16, 2
    x = jax.random.normal(k1, (B, Ci, T), jnp.float32)
    v = jax.random.normal(k2, (Co, Ci, K), jnp.float32)
    g = jax.random.normal(k3, (Co, 1, 1), jnp.float32)
    b = jax.random.normal(k4, (Co,), jnp.float32)
    y = jax.block_until_ready(
        causal_conv1d_elu(x, v, g, b, dilation=dil, compute_dtype=jnp.float32))
    y_ref = _reference(x, v, g, b, dilation=dil)
    assert y.shape == (B, Co, T)
    assert jnp.allclose(y, y_ref, atol=1e-4, rtol=1e-4), "test1 (f32 single tile) mismatch"

    # Test 2: multi-tile time axis; halo across tile edges + ragged last tile.
    k5, k6, k7, k8 = jax.random.split(jax.random.PRNGKey(1), 4)
    B2, Ci2, Co2, K2, T2, d2 = 1, 8, 16, 3, 300, 3
    x2 = jax.random.normal(k5, (B2, Ci2, T2), jnp.float32)
    v2 = jax.random.normal(k6, (Co2, Ci2, K2), jnp.float32)
    g2 = jax.random.normal(k7, (Co2, 1, 1), jnp.float32)
    b2 = jax.random.normal(k8, (Co2,), jnp.float32)
    y2 = jax.block_until_ready(
        causal_conv1d_elu(x2, v2, g2, b2, dilation=d2, time_tile=128,
                          compute_dtype=jnp.float32))
    y2_ref = _reference(x2, v2, g2, b2, dilation=d2)
    assert y2.shape == (B2, Co2, T2)
    assert jnp.allclose(y2, y2_ref, atol=1e-4, rtol=1e-4), "test2 (multi-tile) mismatch"

    # Test 3: default bf16 MXU fast path (f32 accumulation) -> looser tolerance.
    y3 = jax.block_until_ready(
        causal_conv1d_elu(x2, v2, g2, b2, dilation=d2, time_tile=128))
    assert jnp.allclose(y3, y2_ref, atol=1e-1, rtol=1e-1), "test3 (bf16) mismatch"

    # Test 4: wide-channel non-fold path (C_in >= 256), dilation=1.
    k9, k10, k11, k12 = jax.random.split(jax.random.PRNGKey(2), 4)
    B4, Ci4, Co4, K4, T4 = 1, 256, 32, 3, 160
    x4 = jax.random.normal(k9, (B4, Ci4, T4), jnp.float32)
    v4 = jax.random.normal(k10, (Co4, Ci4, K4), jnp.float32)
    g4 = jax.random.normal(k11, (Co4, 1, 1), jnp.float32)
    b4 = jax.random.normal(k12, (Co4,), jnp.float32)
    y4 = jax.block_until_ready(causal_conv1d_elu(x4, v4, g4, b4, compute_dtype=jnp.float32))
    y4_ref = _reference(x4, v4, g4, b4)
    assert jnp.allclose(y4, y4_ref, atol=1e-3, rtol=1e-3), "test4 (non-fold) mismatch"

    # Test 5: kernel_size=1 (no causal pad, no halo input at all).
    v5 = jax.random.normal(k2, (Co, Ci, 1), jnp.float32)
    y5 = jax.block_until_ready(causal_conv1d_elu(x, v5, g, b, compute_dtype=jnp.float32))
    y5_ref = _reference(x, v5, g, b)
    assert jnp.allclose(y5, y5_ref, atol=1e-4, rtol=1e-4), "test5 (k=1) mismatch"

    print("KERNEL_OK")
</pallas_src>

<mosaic_0001>
module attributes {stable_mosaic.version = 11 : i64} {
  func.func @_conv1d_elu_kernel(%arg0: i32, %arg1: i32, %arg2: memref<1x8x16xf32, #tpu.memory_space<vmem>>, %arg3: memref<8x24xf32, #tpu.memory_space<vmem>>, %arg4: memref<8x1xf32, #tpu.memory_space<vmem>>, %arg5: memref<1x8x16xf32, #tpu.memory_space<vmem>>) attributes {dimension_semantics = [#tpu.dimension_semantics<parallel>, #tpu.dimension_semantics<parallel>], iteration_bounds = array<i64: 1, 2>, scalar_prefetch = 0 : i64, scratch_operands = 0 : i64, tpu.core_type = #tpu.core_type<tc>, window_params = [{transform_indices = @transform_0, window_bounds = array<i64: 1, 8, 16>}, {pipeline_mode = #tpu.pipeline_mode<synchronous>, transform_indices = @transform_1, window_bounds = array<i64: 8, 24>}, {pipeline_mode = #tpu.pipeline_mode<synchronous>, transform_indices = @transform_2, window_bounds = array<i64: 8, 1>}, {transform_indices = @transform_3, window_bounds = array<i64: 1, 8, 16>}]} {
    %c0 = arith.constant 0 : index
    %c0_0 = arith.constant 0 : index
    %c0_1 = arith.constant 0 : index
    %0 = vector.load %arg2[%c0, %c0_0, %c0_1] : memref<1x8x16xf32, #tpu.memory_space<vmem>>, vector<1x8x16xf32>
    %1 = vector.shape_cast %0 : vector<1x8x16xf32> to vector<8x16xf32>
    %cst = arith.constant 0.000000e+00 : f32
    %2 = vector.broadcast %cst : f32 to vector<8x4xf32>
    %3 = tpu.concatenate %2, %1 in 1 : vector<8x4xf32>, vector<8x16xf32> -> vector<8x20xf32>
    %4 = vector.extract_strided_slice %3 {offsets = [0, 0], sizes = [8, 16], strides = [1, 1]} : vector<8x20xf32> to vector<8x16xf32>
    %5 = vector.extract_strided_slice %3 {offsets = [0, 2], sizes = [8, 16], strides = [1, 1]} : vector<8x20xf32> to vector<8x16xf32>
    %6 = vector.extract_strided_slice %3 {offsets = [0, 4], sizes = [8, 16], strides = [1, 1]} : vector<8x20xf32> to vector<8x16xf32>
    %7 = tpu.concatenate %4, %5, %6 in 0 : vector<8x16xf32>, vector<8x16xf32>, vector<8x16xf32> -> vector<24x16xf32>
    %c0_2 = arith.constant 0 : index
    %c0_3 = arith.constant 0 : index
    %8 = vector.load %arg3[%c0_2, %c0_3] : memref<8x24xf32, #tpu.memory_space<vmem>>, vector<8x24xf32>
    %cst_4 = arith.constant dense<0.000000e+00> : vector<8x16xf32>
    %9 = tpu.matmul %8, %7, %cst_4 {dimension_numbers = #tpu.dot_dimension_numbers<[1], [0], [0], [1], [0, 0, 1, 1], [], []>, precision = #tpu.contract_precision<fp32>} : vector<8x24xf32>, vector<24x16xf32>, vector<8x16xf32> -> vector<8x16xf32>
    %c0_5 = arith.constant 0 : index
    %c0_6 = arith.constant 0 : index
    %10 = vector.load %arg4[%c0_5, %c0_6] : memref<8x1xf32, #tpu.memory_space<vmem>>, vector<8x1xf32>
    %11 = vector.broadcast %10 : vector<8x1xf32> to vector<8x16xf32>
    %12 = arith.addf %9, %11 : vector<8x16xf32>
    %cst_7 = arith.constant 0.000000e+00 : f32
    %13 = vector.broadcast %cst_7 : f32 to vector<8x16xf32>
    %14 = arith.minimumf %12, %13 : vector<8x16xf32>
    %15 = math.exp %14 : vector<8x16xf32>
    %cst_8 = arith.constant 1.000000e+00 : f32
    %16 = vector.broadcast %cst_8 : f32 to vector<8x16xf32>
    %17 = arith.subf %15, %16 : vector<8x16xf32>
    %cst_9 = arith.constant 0.000000e+00 : f32
    %18 = vector.broadcast %cst_9 : f32 to vector<8x16xf32>
    %19 = arith.cmpf ogt, %12, %18 : vector<8x16xf32>
    %20 = arith.select %19, %12, %17 : vector<8x16xi1>, vector<8x16xf32>
    %c0_10 = arith.constant 0 : index
    %c0_11 = arith.constant 0 : index
    %c0_12 = arith.constant 0 : index
    %21 = vector.load %arg5[%c0_10, %c0_11, %c0_12] : memref<1x8x16xf32, #tpu.memory_space<vmem>>, vector<1x8x16xf32>
    %22 = vector.shape_cast %21 : vector<1x8x16xf32> to vector<8x16xf32>
    %23 = vector.shape_cast %20 : vector<8x16xf32> to vector<1x8x16xf32>
    tpu.vector_store %arg5[%c0_10, %c0_11, %c0_12], %23 {strides = array<i32>} : memref<1x8x16xf32, #tpu.memory_space<vmem>>, vector<1x8x16xf32>,
    return
  }
  func.func @transform_0(%arg0: i32, %arg1: i32) -> (i32, i32, i32) {
    %c0_i32 = arith.constant 0 : i32
    %c0_i32_0 = arith.constant 0 : i32
    return %arg1, %c0_i32, %arg0 : i32, i32, i32
  }
  func.func @transform_1(%arg0: i32, %arg1: i32) -> (i32, i32) {
    %c0_i32 = arith.constant 0 : i32
    %c0_i32_0 = arith.constant 0 : i32
    %c0_i32_1 = arith.constant 0 : i32
    return %c0_i32, %c0_i32_0 : i32, i32
  }
  func.func @transform_2(%arg0: i32, %arg1: i32) -> (i32, i32) {
    %c0_i32 = arith.constant 0 : i32
    %c0_i32_0 = arith.constant 0 : i32
    %c0_i32_1 = arith.constant 0 : i32
    return %c0_i32, %c0_i32_0 : i32, i32
  }
  func.func @transform_3(%arg0: i32, %arg1: i32) -> (i32, i32, i32) {
    %c0_i32 = arith.constant 0 : i32
    %c0_i32_0 = arith.constant 0 : i32
    return %arg1, %c0_i32, %arg0 : i32, i32, i32
  }
}

</mosaic_0001>

<llo_original>
// kernel: tpu_custom_call.1
$region0: #{tpu_custom_call.1}
  #allocation0 [shape = 'u32[]', space=smem, size = 0x4, offset = 0x4, fixed_abs, tag = 'smem constant byte address 0x4 - core index']
  #allocation1 [shape = 'u32[72,128]{1,0:T(1,128)}', space=vmem, size = 0x9000, scoped, tag = 'internal scratch']
  %s0 = inlined_call_operand.hbm [shape: f32[2,8,16], index: 0, kind: input, shape index: {}]
  %s1 = inlined_call_operand.vmem [shape: f32[8,24], index: 1, kind: input, shape index: {}]
  %s2 = inlined_call_operand.vmem [shape: f32[8,1], index: 2, kind: input, shape index: {}]
  %s3 = inlined_call_operand.hbm [shape: f32[2,8,16], index: 3, kind: output, shape index: {}]
  %s4 = sld [smem:[#allocation0]]
  $region49: #{tpu_custom_call.1} parent=0
    _
  %s6 = ssub.s32 1, %s4
  %s7 = scalar_select 0, %s6, %s4
  $region1: #{tpu_custom_call.1} parent=0
    #allocation2 [shape = 'u8[8192]{0}', space=vmem, size = 0x2000, scoped, tag = 'input window, operand 0']
    #allocation3 [shape = 's32[2]{0}', space=sflag, size = 0x8, scoped, tag = 'scoped memory for tpu_custom_call.1']
    #allocation4 [shape = 's32[2]{0}', space=sflag, size = 0x8, scoped, tag = 'scoped memory for tpu_custom_call.1']
    #allocation5 [shape = 'u8[8192]{0}', space=vmem, size = 0x2000, scoped, tag = 'output window, operand 0']
    %8 = vsyncpa [#allocation3], 0
    %s9 = scalar_lea.sflag [#allocation3], 1
    %10 = vsyncpa %s9, 0
    %11 = vsyncpa [#allocation4], 0
    %s12 = scalar_lea.sflag [#allocation4], 1
    %13 = vsyncpa %s12, 0
    loop: start=0, step=1, limit=4
    $region2: #{tpu_custom_call.1} parent=1 // loop_pre_header
      _
    $region3: #{tpu_custom_call.1} parent=1 // loop_header
      %s15 = sphi 0, %s19
      %p16 = scmp.ge.s32.totalorder %s15, 4
      %s22 = sphi 0, %s34
      %s23 = sphi 0, %s30
      %s24 = sphi 0, %s22
      %s25 = sphi 0, %s23
      %s26 = sphi 0, %s24
      %s27 = sphi 0, %s25
      %s39 = sphi 0, %s41
      %s42 = sphi 0, %s39
      %s43 = sphi 0, %s42
      %s59 = sphi 0, %s43
      %s63 = sphi 0, %s63
      %s65 = sphi 0, %s63
      %s66 = sphi 0, %s65
      %s80 = sphi 0, %s66
      %s84 = sphi 0, %s84
      %s86 = sphi 0, %s84
      %s87 = sphi 0, %s86
      %s101 = sphi 0, %s87
      %s109 = sphi 0, %s111
      %s112 = sphi 0, %s109
      %s113 = sphi 0, %s112
      %s129 = sphi 0, %s113
    $region4: #{tpu_custom_call.1} parent=1 // loop_header_branch
      %18 = sbr.rel (%p16) target = $region8
    $region5: #{tpu_custom_call.1} parent=1 // loop_body
      %s20 = ssub.s32 %s15, 1
      %s21 = ssub.s32 %s15, 2
      %s28 = sadd.s32 1, %s23
      %p29 = scmp.ge.s32.totalorder %s28, 2
      %s30 = scalar_select %p29, 0, %s28
      %s31 = sadd.s32 1, %s22
      %s32 = scalar_select %p29, %s31, %s22
      %p33 = scmp.ge.s32.totalorder %s32, 1
      %s34 = scalar_select %p33, 0, %s32
      %s35 = ssub.s32 %s23, %s30
      %s36 = ssub.s32 %s22, %s34
      %s37 = sor.u32 %s35, %s36
      %p38 = scmp.eq.s32.totalorder %s37, 0
      %s40 = sadd.s32 %s39, 1
      %s41 = scalar_select %p38, %s39, %s40
      %p44 = pneg %p38
      %p45 = scmp.eq.s32.totalorder %s15, 1
      %p46 = por %p44, %p45
      %p47 = scmp.ne.s32.totalorder %s39, %s42
      %p48 = scmp.eq.s32.totalorder %s15, 0
      %p49 = por %p47, %p48
      %p50 = scmp.ne.s32.totalorder %s39, %s42
      %p51 = scmp.eq.s32.totalorder %s20, 1
      %p52 = por %p50, %p51
      %p53 = scmp.ne.s32.totalorder %s42, %s43
      %p54 = scmp.eq.s32.totalorder %s20, 0
      %p55 = por %p53, %p54
      %p56 = scmp.ne.s32.totalorder %s42, %s43
      %p57 = scmp.eq.s32.totalorder %s21, 1
      %p58 = por %p56, %p57
      %p60 = scmp.ne.s32.totalorder %s43, %s59
      %p61 = scmp.eq.s32.totalorder %s21, 0
      %p62 = por %p60, %p61
      %s64 = sadd.s32 %s63, 1
      %p67 = scmp.eq.s32.totalorder %s15, 1
      %p68 = scmp.ne.s32.totalorder %s63, %s65
      %p69 = scmp.eq.s32.totalorder %s15, 0
      %p70 = por %p68, %p69
      %p71 = scmp.ne.s32.totalorder %s63, %s65
      %p72 = scmp.eq.s32.totalorder %s20, 1
      %p73 = por %p71, %p72
      %p74 = scmp.ne.s32.totalorder %s65, %s66
      %p75 = scmp.eq.s32.totalorder %s20, 0
      %p76 = por %p74, %p75
      %p77 = scmp.ne.s32.totalorder %s65, %s66
      %p78 = scmp.eq.s32.totalorder %s21, 1
      %p79 = por %p77, %p78
      %p81 = scmp.ne.s32.totalorder %s66, %s80
      %p82 = scmp.eq.s32.totalorder %s21, 0
      %p83 = por %p81, %p82
      %s85 = sadd.s32 %s84, 1
      %p88 = scmp.eq.s32.totalorder %s15, 1
      %p89 = scmp.ne.s32.totalorder %s84, %s86
      %p90 = scmp.eq.s32.totalorder %s15, 0
      %p91 = por %p89, %p90
      %p92 = scmp.ne.s32.totalorder %s84, %s86
      %p93 = scmp.eq.s32.totalorder %s20, 1
      %p94 = por %p92, %p93
      %p95 = scmp.ne.s32.totalorder %s86, %s87
      %p96 = scmp.eq.s32.totalorder %s20, 0
      %p97 = por %p95, %p96
      %p98 = scmp.ne.s32.totalorder %s86, %s87
      %p99 = scmp.eq.s32.totalorder %s21, 1
      %p100 = por %p98, %p99
      %p102 = scmp.ne.s32.totalorder %s87, %s101
      %p103 = scmp.eq.s32.totalorder %s21, 0
      %p104 = por %p102, %p103
      %s105 = ssub.s32 %s23, %s30
      %s106 = ssub.s32 %s22, %s34
      %s107 = sor.u32 %s105, %s106
      %p108 = scmp.eq.s32.totalorder %s107, 0
      %s110 = sadd.s32 %s109, 1
      %s111 = scalar_select %p108, %s109, %s110
      %p114 = pneg %p108
      %p115 = scmp.eq.s32.totalorder %s15, 1
      %p116 = por %p114, %p115
      %p117 = scmp.ne.s32.totalorder %s109, %s112
      %p118 = scmp.eq.s32.totalorder %s15, 0
      %p119 = por %p117, %p118
      %p120 = scmp.ne.s32.totalorder %s109, %s112
      %p121 = scmp.eq.s32.totalorder %s20, 1
      %p122 = por %p120, %p121
      %p123 = scmp.ne.s32.totalorder %s112, %s113
      %p124 = scmp.eq.s32.totalorder %s20, 0
      %p125 = por %p123, %p124
      %p126 = scmp.ne.s32.totalorder %s112, %s113
      %p127 = scmp.eq.s32.totalorder %s21, 1
      %p128 = por %p126, %p127
      %p130 = scmp.ne.s32.totalorder %s113, %s129
      %p131 = scmp.eq.s32.totalorder %s21, 0
      %p132 = por %p130, %p131
      %p133 = scmp.le.s32.totalorder 1, %s15
      %p134 = scmp.lt.s32.totalorder %s15, 3
      %p135 = pnand %p133, %p134
      %p136 = pneg %p135
      // Predicated region
      $region9: #{tpu_custom_call.1} parent=5 // pred_check
        _
      $region10: #{tpu_custom_call.1} parent=5 // pred_check_branch
        %138 = sbr.rel (%p135) target = $region12
      $region11: #{tpu_custom_call.1} parent=5 // pred_region
        %s139 = ssub.s32 %s15, 1
        // Predicated region
        $region13: #{tpu_custom_call.1} parent=11 // pred_check
          %p140 = pneg %p76
        $region14: #{tpu_custom_call.1} parent=11 // pred_check_branch
          %142 = sbr.rel (%p140) target = $region16
        $region15: #{tpu_custom_call.1} parent=11 // pred_region
          _
        $region16: #{tpu_custom_call.1} parent=11 // pred_fallthru
          _
        // Predicated region
        $region17: #{tpu_custom_call.1} parent=11 // pred_check
          %p143 = pneg %p97
        $region18: #{tpu_custom_call.1} parent=11 // pred_check_branch
          %145 = sbr.rel (%p143) target = $region20
        $region19: #{tpu_custom_call.1} parent=11 // pred_region
          _
        $region20: #{tpu_custom_call.1} parent=11 // pred_fallthru
          _
      $region12: #{tpu_custom_call.1} parent=5 // pred_fallthru
        _
      %p146 = scmp.lt.s32.totalorder %s15, 2
      // Predicated region
      $region21: #{tpu_custom_call.1} parent=5 // pred_check
        %p147 = pneg %p146
      $region22: #{tpu_custom_call.1} parent=5 // pred_check_branch
        %149 = sbr.rel (%p147) target = $region24
      $region23: #{tpu_custom_call.1} parent=5 // pred_region
        // Predicated region
        $region25: #{tpu_custom_call.1} parent=23 // pred_check
          %p150 = pneg %p49
        $region26: #{tpu_custom_call.1} parent=23 // pred_check_branch
          %152 = sbr.rel (%p150) target = $region28
        $region27: #{tpu_custom_call.1} parent=23 // pred_region
          %s153 = sand.u32 %s39, 1
          %s154 = scalar_lea.sflag [#allocation3], %s153
          %s155 = sand.u32 %s39, 1
          %s156 = smul.addr %s155, 8
          %s157 = scalar_lea.vmem [#allocation2], %s156
          %159 = vsyncadd %s154, 0
          %s160 = sadd.s32 %s22, %s23
          %s161 = smul.addr %s160, 8
          %s162 = scalar_lea.hbm %s0, %s161
          %s164 = sshll.u32 %s162, 4
          %s165 = int_to_ptr.hbm [resolvable:$true] %s164
          %s166 = sshll.u32 %s157, 4
          %s167 = int_to_ptr.vmem [resolvable:$true] %s166
          %169 = dma.hbm_to_vmem [thread:$0]  %s165, 128, %s167, %s154
        $region28: #{tpu_custom_call.1} parent=23 // pred_fallthru
          _
      $region24: #{tpu_custom_call.1} parent=5 // pred_fallthru
        _
      %p170 = scmp.le.s32.totalorder 1, %s15
      %p171 = scmp.lt.s32.totalorder %s15, 3
      %p172 = pnand %p170, %p171
      %p173 = pneg %p172
      // Predicated region
      $region29: #{tpu_custom_call.1} parent=5 // pred_check
        _
      $region30: #{tpu_custom_call.1} parent=5 // pred_check_branch
        %175 = sbr.rel (%p172) target = $region32
      $region31: #{tpu_custom_call.1} parent=5 // pred_region
        %s176 = ssub.s32 %s15, 1
        %s177 = sand.u32 %s42, 1
        %s178 = scalar_lea.sflag [#allocation3], %s177
        %s179 = sand.u32 %s42, 1
        %s180 = smul.addr %s179, 8
        %s181 = scalar_lea.vmem [#allocation2], %s180
        // Predicated region
        $region33: #{tpu_custom_call.1} parent=31 // pred_check
          %p182 = pneg %p55
        $region34: #{tpu_custom_call.1} parent=31 // pred_check_branch
          %184 = sbr.rel (%p182) target = $region36
        $region35: #{tpu_custom_call.1} parent=31 // pred_region
          %186 = dma.done %s178, 128
        $region36: #{tpu_custom_call.1} parent=31 // pred_fallthru
          _
        %s187 = sand.u32 %s42, 1
        %s188 = scalar_lea.sflag [#allocation3], %s187
        %s189 = sand.u32 %s42, 1
        %s190 = smul.addr %s189, 8
        %s191 = scalar_lea.vmem [#allocation2], %s190
        %p192 = pneg %p55
        %p193 = pneg %p52
        %p194 = pneg %p76
        %p195 = pneg %p73
        %p196 = pneg %p97
        %p197 = pneg %p94
        %p198 = pneg %p125
        %p199 = pneg %p122
        %s200 = sand.u32 %s112, 1
        %s201 = scalar_lea.sflag [#allocation4], %s200
        %s202 = sand.u32 %s112, 1
        %s203 = smul.addr %s202, 8
        %s204 = scalar_lea.vmem [#allocation5], %s203
        %v205 = vld [vmem:[%s181] sm:$0xff]
        %207 = vrot.lane.b32.xlu0 %v205, 4
        %v208 = vpop.permute.xlu0 %207
        %vm210 = vcmask 31744
        %v211 = vsel %vm210, 0.0, %v208
        %213 = vrot.lane.b32.xlu0 %v211, 126
        %v214 = vpop.permute.xlu0 %213
        %216 = vrot.lane.b32.xlu0 %v211, 124
        %v217 = vpop.permute.xlu0 %216
        %v219 = vld [vmem:[%s1] sm:$0xff]
        %v220 = vld [vmem:[%s2] sm:$0xff]
        %222 = vset.pattern.permute.xlu0 0
        %223 = vperm.xlu0 %222, %v220
        %v224 = vpop.permute.xlu0 %223
        %vm226 = vcmask 195584
        %v228 = vsel %vm226, %v219, 0
        %230 = vmatpush.msra.mxu0 0.0
        %231 = vmatpush.msra.mxu0 0.0
        %232 = vmatpush.msra.mxu0 0.0
        %233 = vmatpush.msra.mxu0 0.0
        %234 = vmatpush.msra.mxu0 0.0
        %235 = vmatpush.msra.mxu0 0.0
        %236 = vmatpush.msra.mxu0 0.0
        %237 = vmatpush.msra.mxu0 0.0
        %238 = vmatpush.msra.mxu0 0.0
        %239 = vmatpush.msra.mxu0 0.0
        %240 = vmatpush.msra.mxu0 0.0
        %241 = vmatpush.msra.mxu0 0.0
        %242 = vmatpush.msra.mxu0 0.0
        %v243 = vand.u32 %v217, 4294901760
        %244 = vmatpush.msra.mxu0 %v243
        %v245 = vand.u32 %v214, 4294901760
        %246 = vmatpush.msra.mxu0 %v245
        %v247 = vand.u32 %v211, 4294901760
        %248 = vmatpush.msra.mxu0 %v247
        %v249 = vand.u32 %v228, 4294901760
        %v250 = vsub.f32 %v228, %v249
        %v251 = vand.u32 %v250, 4294901760
        %v252 = vsub.f32 %v250, %v251
        %v253 = vand.u32 %v252, 4294901760
        %254 = vmatmul.f32.gmra.mxu0 %v253
        %v255 = vpop.f32.mrf.mxu0
        %v256 = vadd.f32 %v224, %v255
        %257 = vdwg.mxu0
        %258 = vmatpush.msra.mxu0 0.0
        %259 = vmatpush.msra.mxu0 0.0
        %260 = vmatpush.msra.mxu0 0.0
        %261 = vmatpush.msra.mxu0 0.0
        %262 = vmatpush.msra.mxu0 0.0
        %263 = vmatpush.msra.mxu0 0.0
        %264 = vmatpush.msra.mxu0 0.0
        %265 = vmatpush.msra.mxu0 0.0
        %266 = vmatpush.msra.mxu0 0.0
        %267 = vmatpush.msra.mxu0 0.0
        %268 = vmatpush.msra.mxu0 0.0
        %269 = vmatpush.msra.mxu0 0.0
        %270 = vmatpush.msra.mxu0 0.0
        %v271 = vand.u32 %v217, 4294901760
        %v272 = vsub.f32 %v217, %v271
        %v273 = vand.u32 %v272, 4294901760
        %v274 = vsub.f32 %v272, %v273
        %v275 = vand.u32 %v274, 4294901760
        %276 = vmatpush.msra.mxu0 %v275
        %v277 = vand.u32 %v214, 4294901760
        %v278 = vsub.f32 %v214, %v277
        %v279 = vand.u32 %v278, 4294901760
        %v280 = vsub.f32 %v278, %v279
        %v281 = vand.u32 %v280, 4294901760
        %282 = vmatpush.msra.mxu0 %v281
        %v283 = vand.u32 %v211, 4294901760
        %v284 = vsub.f32 %v211, %v283
        %v285 = vand.u32 %v284, 4294901760
        %v286 = vsub.f32 %v284, %v285
        %v287 = vand.u32 %v286, 4294901760
        %288 = vmatpush.msra.mxu0 %v287
        %v289 = vand.u32 %v228, 4294901760
        %290 = vmatmul.f32.gmra.mxu0 %v289
        %v291 = vpop.f32.mrf.mxu0
        %v292 = vadd.f32 %v256, %v291
        %293 = vdwg.mxu0
        %294 = vmatpush.msra.mxu0 0.0
        %295 = vmatpush.msra.mxu0 0.0
        %296 = vmatpush.msra.mxu0 0.0
        %297 = vmatpush.msra.mxu0 0.0
        %298 = vmatpush.msra.mxu0 0.0
        %299 = vmatpush.msra.mxu0 0.0
        %300 = vmatpush.msra.mxu0 0.0
        %301 = vmatpush.msra.mxu0 0.0
        %302 = vmatpush.msra.mxu0 0.0
        %303 = vmatpush.msra.mxu0 0.0
        %304 = vmatpush.msra.mxu0 0.0
        %305 = vmatpush.msra.mxu0 0.0
        %306 = vmatpush.msra.mxu0 0.0
        %v307 = vand.u32 %v217, 4294901760
        %v308 = vsub.f32 %v217, %v307
        %309 = vmatpush.msra.mxu0 %v308
        %v310 = vand.u32 %v214, 4294901760
        %v311 = vsub.f32 %v214, %v310
        %312 = vmatpush.msra.mxu0 %v311
        %v313 = vand.u32 %v211, 4294901760
        %v314 = vsub.f32 %v211, %v313
        %315 = vmatpush.msra.mxu0 %v314
        %v316 = vand.u32 %v228, 4294901760
        %v317 = vsub.f32 %v228, %v316
        %318 = vmatmul.f32.gmra.mxu0 %v317
        %v319 = vpop.f32.mrf.mxu0
        %v320 = vadd.f32 %v292, %v319
        %321 = vdwg.mxu0
        %322 = vmatpush.msra.mxu0 0.0
        %323 = vmatpush.msra.mxu0 0.0
        %324 = vmatpush.msra.mxu0 0.0
        %325 = vmatpush.msra.mxu0 0.0
        %326 = vmatpush.msra.mxu0 0.0
        %327 = vmatpush.msra.mxu0 0.0
        %328 = vmatpush.msra.mxu0 0.0
        %329 = vmatpush.msra.mxu0 0.0
        %330 = vmatpush.msra.mxu0 0.0
        %331 = vmatpush.msra.mxu0 0.0
        %332 = vmatpush.msra.mxu0 0.0
        %333 = vmatpush.msra.mxu0 0.0
        %334 = vmatpush.msra.mxu0 0.0
        %v335 = vand.u32 %v217, 4294901760
        %336 = vmatpush.msra.mxu0 %v335
        %v337 = vand.u32 %v214, 4294901760
        %338 = vmatpush.msra.mxu0 %v337
        %v339 = vand.u32 %v211, 4294901760
        %340 = vmatpush.msra.mxu0 %v339
        %v341 = vand.u32 %v228, 4294901760
        %v342 = vsub.f32 %v228, %v341
        %v343 = vand.u32 %v342, 4294901760
        %344 = vmatmul.f32.gmra.mxu0 %v343
        %v345 = vpop.f32.mrf.mxu0
        %v346 = vadd.f32 %v320, %v345
        %347 = vdwg.mxu0
        %348 = vmatpush.msra.mxu0 0.0
        %349 = vmatpush.msra.mxu0 0.0
        %350 = vmatpush.msra.mxu0 0.0
        %351 = vmatpush.msra.mxu0 0.0
        %352 = vmatpush.msra.mxu0 0.0
        %353 = vmatpush.msra.mxu0 0.0
        %354 = vmatpush.msra.mxu0 0.0
        %355 = vmatpush.msra.mxu0 0.0
        %356 = vmatpush.msra.mxu0 0.0
        %357 = vmatpush.msra.mxu0 0.0
        %358 = vmatpush.msra.mxu0 0.0
        %359 = vmatpush.msra.mxu0 0.0
        %360 = vmatpush.msra.mxu0 0.0
        %v361 = vand.u32 %v217, 4294901760
        %v362 = vsub.f32 %v217, %v361
        %v363 = vand.u32 %v362, 4294901760
        %364 = vmatpush.msra.mxu0 %v363
        %v365 = vand.u32 %v214, 4294901760
        %v366 = vsub.f32 %v214, %v365
        %v367 = vand.u32 %v366, 4294901760
        %368 = vmatpush.msra.mxu0 %v367
        %v369 = vand.u32 %v211, 4294901760
        %v370 = vsub.f32 %v211, %v369
        %v371 = vand.u32 %v370, 4294901760
        %372 = vmatpush.msra.mxu0 %v371
        %v373 = vand.u32 %v228, 4294901760
        %374 = vmatmul.f32.gmra.mxu0 %v373
        %v375 = vpop.f32.mrf.mxu0
        %v376 = vadd.f32 %v346, %v375
        %377 = vdwg.mxu0
        %378 = vmatpush.msra.mxu0 0.0
        %379 = vmatpush.msra.mxu0 0.0
        %380 = vmatpush.msra.mxu0 0.0
        %381 = vmatpush.msra.mxu0 0.0
        %382 = vmatpush.msra.mxu0 0.0
        %383 = vmatpush.msra.mxu0 0.0
        %384 = vmatpush.msra.mxu0 0.0
        %385 = vmatpush.msra.mxu0 0.0
        %386 = vmatpush.msra.mxu0 0.0
        %387 = vmatpush.msra.mxu0 0.0
        %388 = vmatpush.msra.mxu0 0.0
        %389 = vmatpush.msra.mxu0 0.0
        %390 = vmatpush.msra.mxu0 0.0
        %v391 = vand.u32 %v217, 4294901760
        %392 = vmatpush.msra.mxu0 %v391
        %v393 = vand.u32 %v214, 4294901760
        %394 = vmatpush.msra.mxu0 %v393
        %v395 = vand.u32 %v211, 4294901760
        %396 = vmatpush.msra.mxu0 %v395
        %v397 = vand.u32 %v228, 4294901760
        %398 = vmatmul.f32.gmra.mxu0 %v397
        %v399 = vpop.f32.mrf.mxu0
        %v400 = vadd.f32 %v376, %v399
        %401 = vdwg.mxu0
        %v402 = vmin.f32 %v400, 0.0
        %v403 = vmul.f32 %v402, 1.442695
        %v404 = vpow.pop %v403
        %v405 = vsub.f32 %v404, 1.0
        %vm406 = vcmp.gt.f32.partialorder %v400, 0.0
        %v407 = vsel %vm406, %v400, %v405
        %vm408 = vcmask 130048
        %409 = vst.msk [vmem:[%s204] sm:$0xff] %vm408, %v407
        %s410 = sand.u32 %s112, 1
        %s411 = scalar_lea.sflag [#allocation4], %s410
        %s412 = sand.u32 %s112, 1
        %s413 = smul.addr %s412, 8
        %s414 = scalar_lea.vmem [#allocation5], %s413
        // Predicated region
        $region37: #{tpu_custom_call.1} parent=31 // pred_check
          %p415 = pneg %p122
        $region38: #{tpu_custom_call.1} parent=31 // pred_check_branch
          %417 = sbr.rel (%p415) target = $region40
        $region39: #{tpu_custom_call.1} parent=31 // pred_region
          %419 = vsyncadd %s411, 0
          %s420 = sadd.s32 %s24, %s25
          %s421 = smul.addr %s420, 8
          %s422 = scalar_lea.hbm %s3, %s421
          %s424 = sshll.u32 %s414, 4
          %s425 = int_to_ptr.vmem [resolvable:$true] %s424
          %s426 = sshll.u32 %s422, 4
          %s427 = int_to_ptr.hbm [resolvable:$true] %s426
          %429 = dma.vmem_to_hbm [thread:$0]  %s425, 128, %s427, %s411
        $region40: #{tpu_custom_call.1} parent=31 // pred_fallthru
          _
      $region32: #{tpu_custom_call.1} parent=5 // pred_fallthru
        _
      %p430 = scmp.le.s32.totalorder 2, %s15
      // Predicated region
      $region41: #{tpu_custom_call.1} parent=5 // pred_check
        %p431 = pneg %p430
      $region42: #{tpu_custom_call.1} parent=5 // pred_check_branch
        %433 = sbr.rel (%p431) target = $region44
      $region43: #{tpu_custom_call.1} parent=5 // pred_region
        %s434 = ssub.s32 %s15, 2
        // Predicated region
        $region45: #{tpu_custom_call.1} parent=43 // pred_check
          %p435 = pneg %p128
        $region46: #{tpu_custom_call.1} parent=43 // pred_check_branch
          %437 = sbr.rel (%p435) target = $region48
        $region47: #{tpu_custom_call.1} parent=43 // pred_region
          %s438 = sand.u32 %s113, 1
          %s439 = scalar_lea.sflag [#allocation4], %s438
          %s440 = sand.u32 %s113, 1
          %s441 = smul.addr %s440, 8
          %s442 = scalar_lea.vmem [#allocation5], %s441
          %444 = dma.done %s439, 128
        $region48: #{tpu_custom_call.1} parent=43 // pred_fallthru
          _
      $region44: #{tpu_custom_call.1} parent=5 // pred_fallthru
        _
    $region6: #{tpu_custom_call.1} parent=1 // loop_footer
      %s19 = sadd.s32 1, %s15
    $region7: #{tpu_custom_call.1} parent=1 // loop_footer_branch
      %14 = sbr.rel target = $region3
    $region8: #{tpu_custom_call.1} parent=1 // loop_exit
      _
    %445 = vsyncpa [#allocation3], 1
    %s446 = scalar_lea.sflag [#allocation3], 1
    %447 = vsyncpa %s446, 1
    %448 = vsyncpa [#allocation4], 1
    %s449 = scalar_lea.sflag [#allocation4], 1
    %450 = vsyncpa %s449, 1

</llo_original>
